<compile_context>
chip_gen: v5e
topology: v5e:2x2
jax: 0.10.0
libtpu: 0.0.40
codegen_flags: <defaults>
</compile_context>

<pallas_src>
import numpy as np

import jax
import jax.numpy as jnp
from jax.experimental import pallas as pl
from jax.experimental.pallas import tpu as pltpu

ROW, COL = 40, 6                     # input feature map H, W (module spec)
C_OUT = 4                            # conv output channels
K = 5                                # conv kernel size
PAD = 2
PH, PW = ROW // 2, COL // 2          # pooled H, W = 20, 3
FLAT_IN = ROW * COL                  # 240 raw input features per example
FLAT_POOL = C_OUT * PH * PW          # 240 pooled features (torch flatten order)
POOL_PAD = 256                       # lane-aligned chunk stride (>= FLAT_POOL)
NCONV = 4 * POOL_PAD                 # 1024 conv-output lanes (4 pool-window taps)
HID = 100
HID_PAD = 128
NCLS = 5
MAX_TB = 256                         # fixed batch-tile cap (sublane dim)


# ---------------------------------------------------------------------------
# Static index tables for the banded conv matrix (built once at import time).
# Conv-output lane  o = q*256 + m,  q = 2*dh + dw (pool-window tap),
#                   m = c*60 + i*3 + j (torch flatten order of the pooled map).
# Input lane        f = h_in*6 + w_in (row-major flatten of the 40x6 image).
# ---------------------------------------------------------------------------
def _build_wmat_indices():
    rows, cols, widx = [], [], []
    for c in range(C_OUT):
        for i in range(PH):
            for j in range(PW):
                m = c * PH * PW + i * PW + j
                for dh in range(2):
                    for dw in range(2):
                        o = (2 * dh + dw) * POOL_PAD + m
                        h_out, w_out = 2 * i + dh, 2 * j + dw
                        for ki in range(K):
                            for kj in range(K):
                                h_in = h_out + ki - PAD
                                w_in = w_out + kj - PAD
                                if 0 <= h_in < ROW and 0 <= w_in < COL:
                                    rows.append(h_in * COL + w_in)
                                    cols.append(o)
                                    widx.append(c * K * K + ki * K + kj)
    return (np.asarray(rows, np.int32), np.asarray(cols, np.int32),
            np.asarray(widx, np.int32))


_WM_ROWS, _WM_COLS, _WM_WIDX = _build_wmat_indices()
_PB_CIDX = (np.arange(FLAT_POOL) // (PH * PW)).astype(np.int32)   # channel of lane m


# ---------------------------------------------------------------------------
# One-time parameter preparation (keep OUT of the per-call forward).
# compute_dtype=jnp.bfloat16 gives ~3x MXU throughput on v7x/v6e (accumulation
# stays f32); default f32 preserves exact agreement with the f32 reference.
# ---------------------------------------------------------------------------
def prepare_params(params, compute_dtype=jnp.float32):
    w_conv, b_conv, w1, b1, w2, b2 = params
    wvals = w_conv.reshape(-1)[_WM_WIDX]
    wmat = (jnp.zeros((FLAT_IN, NCONV), jnp.float32)
            .at[_WM_ROWS, _WM_COLS].add(wvals.astype(jnp.float32)))
    pbias = (jnp.zeros((1, POOL_PAD), jnp.float32)
             .at[0, :FLAT_POOL].set(b_conv.astype(jnp.float32)[_PB_CIDX]))
    w1p = (jnp.zeros((POOL_PAD, HID_PAD), jnp.float32)
           .at[:FLAT_POOL, :HID].set(w1.astype(jnp.float32)))
    b1p = jnp.zeros((1, HID_PAD), jnp.float32).at[0, :HID].set(b1.astype(jnp.float32))
    w2p = jnp.zeros((HID_PAD, NCLS), jnp.float32).at[:HID, :].set(w2.astype(jnp.float32))
    b2r = b2.reshape(1, NCLS).astype(jnp.float32)
    return (wmat.astype(compute_dtype), pbias,
            w1p.astype(compute_dtype), b1p,
            w2p.astype(compute_dtype), b2r)


# ---------------------------------------------------------------------------
# Fused kernel: conv (banded MXU matmul) + pool + ReLU + MLP + log_softmax.
# Batch on sublanes, features on lanes throughout.
# ---------------------------------------------------------------------------
def fg_fused_kernel(x_ref, wmat_ref, pbias_ref, w1_ref, b1_ref, w2_ref, b2_ref,
                    out_ref):
    cdt = wmat_ref.dtype

    # Conv(5x5, pad=2) as one matmul; zero padding is baked into wmat.
    z = jnp.dot(x_ref[...].astype(cdt), wmat_ref[...],
                preferred_element_type=jnp.float32)               # (TB, 1024) f32

    # 2x2 max-pool = 3 elementwise maxes over four lane-aligned 256-wide chunks.
    pooled = jnp.maximum(
        jnp.maximum(z[:, 0 * POOL_PAD:1 * POOL_PAD], z[:, 1 * POOL_PAD:2 * POOL_PAD]),
        jnp.maximum(z[:, 2 * POOL_PAD:3 * POOL_PAD], z[:, 3 * POOL_PAD:4 * POOL_PAD]))

    # Conv bias (constant over each window) + ReLU after the pool: identical to
    # torch's conv+bias -> ReLU -> pool since ReLU is monotone.
    act = jnp.maximum(pooled + pbias_ref[...], 0.0)               # (TB, 256) f32

    # fc1 (240->100, padded to 256->128) + ReLU.
    h = jnp.dot(act.astype(cdt), w1_ref[...],
                preferred_element_type=jnp.float32) + b1_ref[...]
    h = jnp.maximum(h, 0.0)                                       # (TB, 128) f32

    # fc2 (100->5, K padded to 128) + log_softmax over class lanes.
    logits = (jnp.dot(h.astype(cdt), w2_ref[...],
                      preferred_element_type=jnp.float32) + b2_ref[...])  # (TB, 5)
    m = jnp.max(logits, axis=1, keepdims=True)
    s = logits - m
    lse = jnp.log(jnp.sum(jnp.exp(s), axis=1, keepdims=True))
    out_ref[...] = (s - lse).astype(out_ref.dtype)


# ---------------------------------------------------------------------------
# Wrapper
# ---------------------------------------------------------------------------
def _round_up(n, m):
    return ((n + m - 1) // m) * m


def fg_net_cnn_forward(x, prepared):
    """x: (B, 1, 40, 6) float32 NCHW (like the PyTorch module)."""
    wmat, pbias, w1p, b1p, w2p, b2r = prepared
    B = x.shape[0]

    # Free reshape (contiguous NCHW -> (B, H*W)); no transpose, no HBM round trip.
    x_flat = x.reshape(B, FLAT_IN).astype(jnp.float32)

    # Fixed batch tile on the sublane axis, capped so per-step VMEM stays small
    # on every TPU generation; ragged last block is masked by Pallas.
    TB = min(MAX_TB, _round_up(B, 8))
    grid = (pl.cdiv(B, TB),)

    return pl.pallas_call(
        fg_fused_kernel,
        out_shape=jax.ShapeDtypeStruct((B, NCLS), jnp.float32),
        grid=grid,
        in_specs=[
            pl.BlockSpec((TB, FLAT_IN), lambda b: (b, 0)),
            pl.BlockSpec((FLAT_IN, NCONV), lambda b: (0, 0)),
            pl.BlockSpec((1, POOL_PAD), lambda b: (0, 0)),
            pl.BlockSpec((POOL_PAD, HID_PAD), lambda b: (0, 0)),
            pl.BlockSpec((1, HID_PAD), lambda b: (0, 0)),
            pl.BlockSpec((HID_PAD, NCLS), lambda b: (0, 0)),
            pl.BlockSpec((1, NCLS), lambda b: (0, 0)),
        ],
        out_specs=pl.BlockSpec((TB, NCLS), lambda b: (b, 0)),
        compiler_params=pltpu.CompilerParams(
            dimension_semantics=("parallel",)),   # megacore split over batch tiles
    )(x_flat, wmat, pbias, w1p, b1p, w2p, b2r)


# ---------------------------------------------------------------------------
# Parameters + pure-JAX reference (eval-mode dropout)
# ---------------------------------------------------------------------------
def init_params(key):
    k1, k2, k3, k4, k5, k6 = jax.random.split(key, 6)
    w_conv = jax.random.normal(k1, (C_OUT, 1, K, K), jnp.float32) * 0.2
    b_conv = jax.random.normal(k2, (C_OUT,), jnp.float32) * 0.1
    w1 = jax.random.normal(k3, (FLAT_POOL, HID), jnp.float32) * (1.0 / jnp.sqrt(FLAT_POOL))
    b1 = jax.random.normal(k4, (HID,), jnp.float32) * 0.05
    w2 = jax.random.normal(k5, (HID, NCLS), jnp.float32) * (1.0 / jnp.sqrt(HID))
    b2 = jax.random.normal(k6, (NCLS,), jnp.float32) * 0.05
    return (w_conv, b_conv, w1, b1, w2, b2)


def reference_forward(x, params):
    w_conv, b_conv, w1, b1, w2, b2 = params
    y = jax.lax.conv_general_dilated(
        x, w_conv, window_strides=(1, 1), padding=((2, 2), (2, 2)),
        dimension_numbers=("NCHW", "OIHW", "NCHW"))
    y = y + b_conv.reshape(1, C_OUT, 1, 1)
    y = jnp.maximum(y, 0.0)
    y = jax.lax.reduce_window(y, -jnp.inf, jax.lax.max,
                              (1, 1, 2, 2), (1, 1, 2, 2), "VALID")
    y = y.reshape(x.shape[0], -1)
    y = jnp.maximum(y @ w1 + b1, 0.0)
    y = y @ w2 + b2
    return jax.nn.log_softmax(y, axis=1)


if __name__ == "__main__":
    key = jax.random.PRNGKey(0)
    kp, kx = jax.random.split(key)
    params = init_params(kp)
    prepared = prepare_params(params)   # f32 exact; pass jnp.bfloat16 for v7x/v6e speed
    x = jax.random.normal(kx, (2, 1, ROW, COL), jnp.float32)   # (B=2, C=1, 40, 6)

    out = fg_net_cnn_forward(x, prepared)
    out = jax.block_until_ready(out)

    ref = reference_forward(x, params)
    assert out.shape == (2, NCLS)
    err = jnp.max(jnp.abs(out - ref))
    assert jnp.allclose(out, ref, atol=1e-4, rtol=1e-4), f"max abs err {err}"

    print("KERNEL_OK")
</pallas_src>

<mosaic_0001>
module attributes {stable_mosaic.version = 11 : i64} {
  func.func @fg_fused_kernel(%arg0: i32, %arg1: memref<8x240xf32, #tpu.memory_space<vmem>>, %arg2: memref<240x1024xf32, #tpu.memory_space<vmem>>, %arg3: memref<1x256xf32, #tpu.memory_space<vmem>>, %arg4: memref<256x128xf32, #tpu.memory_space<vmem>>, %arg5: memref<1x128xf32, #tpu.memory_space<vmem>>, %arg6: memref<128x5xf32, #tpu.memory_space<vmem>>, %arg7: memref<1x5xf32, #tpu.memory_space<vmem>>, %arg8: memref<8x5xf32, #tpu.memory_space<vmem>>) attributes {dimension_semantics = [#tpu.dimension_semantics<parallel>], iteration_bounds = array<i64: 1>, scalar_prefetch = 0 : i64, scratch_operands = 0 : i64, tpu.core_type = #tpu.core_type<tc>, window_params = [{transform_indices = @transform_0, window_bounds = array<i64: 8, 240>}, {pipeline_mode = #tpu.pipeline_mode<synchronous>, transform_indices = @transform_1, window_bounds = array<i64: 240, 1024>}, {pipeline_mode = #tpu.pipeline_mode<synchronous>, transform_indices = @transform_2, window_bounds = array<i64: 1, 256>}, {pipeline_mode = #tpu.pipeline_mode<synchronous>, transform_indices = @transform_3, window_bounds = array<i64: 256, 128>}, {pipeline_mode = #tpu.pipeline_mode<synchronous>, transform_indices = @transform_4, window_bounds = array<i64: 1, 128>}, {pipeline_mode = #tpu.pipeline_mode<synchronous>, transform_indices = @transform_5, window_bounds = array<i64: 128, 5>}, {pipeline_mode = #tpu.pipeline_mode<synchronous>, transform_indices = @transform_6, window_bounds = array<i64: 1, 5>}, {transform_indices = @transform_7, window_bounds = array<i64: 8, 5>}]} {
    %c0 = arith.constant 0 : index
    %c0_0 = arith.constant 0 : index
    %0 = vector.load %arg1[%c0, %c0_0] : memref<8x240xf32, #tpu.memory_space<vmem>>, vector<8x240xf32>
    %c0_1 = arith.constant 0 : index
    %c0_2 = arith.constant 0 : index
    %1 = vector.load %arg2[%c0_1, %c0_2] : memref<240x1024xf32, #tpu.memory_space<vmem>>, vector<240x1024xf32>
    %cst = arith.constant dense<0.000000e+00> : vector<8x1024xf32>
    %2 = tpu.matmul %0, %1, %cst {dimension_numbers = #tpu.dot_dimension_numbers<[1], [0], [0], [1], [0, 0, 1, 1], [], []>} : vector<8x240xf32>, vector<240x1024xf32>, vector<8x1024xf32> -> vector<8x1024xf32>
    %3 = vector.extract_strided_slice %2 {offsets = [0, 0], sizes = [8, 256], strides = [1, 1]} : vector<8x1024xf32> to vector<8x256xf32>
    %4 = vector.extract_strided_slice %2 {offsets = [0, 256], sizes = [8, 256], strides = [1, 1]} : vector<8x1024xf32> to vector<8x256xf32>
    %5 = arith.maximumf %3, %4 : vector<8x256xf32>
    %6 = vector.extract_strided_slice %2 {offsets = [0, 512], sizes = [8, 256], strides = [1, 1]} : vector<8x1024xf32> to vector<8x256xf32>
    %7 = vector.extract_strided_slice %2 {offsets = [0, 768], sizes = [8, 256], strides = [1, 1]} : vector<8x1024xf32> to vector<8x256xf32>
    %8 = arith.maximumf %6, %7 : vector<8x256xf32>
    %9 = arith.maximumf %5, %8 : vector<8x256xf32>
    %c0_3 = arith.constant 0 : index
    %c0_4 = arith.constant 0 : index
    %10 = vector.load %arg3[%c0_3, %c0_4] : memref<1x256xf32, #tpu.memory_space<vmem>>, vector<1x256xf32>
    %11 = vector.broadcast %10 : vector<1x256xf32> to vector<8x256xf32>
    %12 = arith.addf %9, %11 : vector<8x256xf32>
    %cst_5 = arith.constant 0.000000e+00 : f32
    %13 = vector.broadcast %cst_5 : f32 to vector<8x256xf32>
    %14 = arith.maximumf %12, %13 : vector<8x256xf32>
    %c0_6 = arith.constant 0 : index
    %c0_7 = arith.constant 0 : index
    %15 = vector.load %arg4[%c0_6, %c0_7] : memref<256x128xf32, #tpu.memory_space<vmem>>, vector<256x128xf32>
    %cst_8 = arith.constant dense<0.000000e+00> : vector<8x128xf32>
    %16 = tpu.matmul %14, %15, %cst_8 {dimension_numbers = #tpu.dot_dimension_numbers<[1], [0], [0], [1], [0, 0, 1, 1], [], []>} : vector<8x256xf32>, vector<256x128xf32>, vector<8x128xf32> -> vector<8x128xf32>
    %c0_9 = arith.constant 0 : index
    %c0_10 = arith.constant 0 : index
    %17 = vector.load %arg5[%c0_9, %c0_10] : memref<1x128xf32, #tpu.memory_space<vmem>>, vector<1x128xf32>
    %18 = vector.broadcast %17 : vector<1x128xf32> to vector<8x128xf32>
    %19 = arith.addf %16, %18 : vector<8x128xf32>
    %cst_11 = arith.constant 0.000000e+00 : f32
    %20 = vector.broadcast %cst_11 : f32 to vector<8x128xf32>
    %21 = arith.maximumf %19, %20 : vector<8x128xf32>
    %c0_12 = arith.constant 0 : index
    %c0_13 = arith.constant 0 : index
    %22 = vector.load %arg6[%c0_12, %c0_13] : memref<128x5xf32, #tpu.memory_space<vmem>>, vector<128x5xf32>
    %cst_14 = arith.constant dense<0.000000e+00> : vector<8x5xf32>
    %23 = tpu.matmul %21, %22, %cst_14 {dimension_numbers = #tpu.dot_dimension_numbers<[1], [0], [0], [1], [0, 0, 1, 1], [], []>} : vector<8x128xf32>, vector<128x5xf32>, vector<8x5xf32> -> vector<8x5xf32>
    %c0_15 = arith.constant 0 : index
    %c0_16 = arith.constant 0 : index
    %24 = vector.load %arg7[%c0_15, %c0_16] : memref<1x5xf32, #tpu.memory_space<vmem>>, vector<1x5xf32>
    %25 = vector.broadcast %24 : vector<1x5xf32> to vector<8x5xf32>
    %26 = arith.addf %23, %25 : vector<8x5xf32>
    %cst_17 = arith.constant dense<0xFF800000> : vector<8xf32>
    %27 = vector.multi_reduction <maximumf>, %26, %cst_17 [1] : vector<8x5xf32> to vector<8xf32>
    %28 = vector.shape_cast %27 : vector<8xf32> to vector<8x1xf32>
    %29 = vector.broadcast %28 : vector<8x1xf32> to vector<8x5xf32>
    %30 = arith.subf %26, %29 : vector<8x5xf32>
    %31 = math.exp %30 : vector<8x5xf32>
    %cst_18 = arith.constant dense<0.000000e+00> : vector<8xf32>
    %32 = vector.multi_reduction <add>, %31, %cst_18 [1] : vector<8x5xf32> to vector<8xf32>
    %33 = vector.shape_cast %32 : vector<8xf32> to vector<8x1xf32>
    %34 = math.log %33 : vector<8x1xf32>
    %35 = vector.broadcast %34 : vector<8x1xf32> to vector<8x5xf32>
    %36 = arith.subf %30, %35 : vector<8x5xf32>
    %c0_19 = arith.constant 0 : index
    %c0_20 = arith.constant 0 : index
    %37 = vector.load %arg8[%c0_19, %c0_20] : memref<8x5xf32, #tpu.memory_space<vmem>>, vector<8x5xf32>
    tpu.vector_store %arg8[%c0_19, %c0_20], %36 {strides = array<i32>} : memref<8x5xf32, #tpu.memory_space<vmem>>, vector<8x5xf32>,
    return
  }
  func.func @transform_0(%arg0: i32) -> (i32, i32) {
    %c0_i32 = arith.constant 0 : i32
    %c0_i32_0 = arith.constant 0 : i32
    return %arg0, %c0_i32 : i32, i32
  }
  func.func @transform_1(%arg0: i32) -> (i32, i32) {
    %c0_i32 = arith.constant 0 : i32
    %c0_i32_0 = arith.constant 0 : i32
    %c0_i32_1 = arith.constant 0 : i32
    return %c0_i32, %c0_i32_0 : i32, i32
  }
  func.func @transform_2(%arg0: i32) -> (i32, i32) {
    %c0_i32 = arith.constant 0 : i32
    %c0_i32_0 = arith.constant 0 : i32
    %c0_i32_1 = arith.constant 0 : i32
    return %c0_i32, %c0_i32_0 : i32, i32
  }
  func.func @transform_3(%arg0: i32) -> (i32, i32) {
    %c0_i32 = arith.constant 0 : i32
    %c0_i32_0 = arith.constant 0 : i32
    %c0_i32_1 = arith.constant 0 : i32
    return %c0_i32, %c0_i32_0 : i32, i32
  }
  func.func @transform_4(%arg0: i32) -> (i32, i32) {
    %c0_i32 = arith.constant 0 : i32
    %c0_i32_0 = arith.constant 0 : i32
    %c0_i32_1 = arith.constant 0 : i32
    return %c0_i32, %c0_i32_0 : i32, i32
  }
  func.func @transform_5(%arg0: i32) -> (i32, i32) {
    %c0_i32 = arith.constant 0 : i32
    %c0_i32_0 = arith.constant 0 : i32
    %c0_i32_1 = arith.constant 0 : i32
    return %c0_i32, %c0_i32_0 : i32, i32
  }
  func.func @transform_6(%arg0: i32) -> (i32, i32) {
    %c0_i32 = arith.constant 0 : i32
    %c0_i32_0 = arith.constant 0 : i32
    %c0_i32_1 = arith.constant 0 : i32
    return %c0_i32, %c0_i32_0 : i32, i32
  }
  func.func @transform_7(%arg0: i32) -> (i32, i32) {
    %c0_i32 = arith.constant 0 : i32
    %c0_i32_0 = arith.constant 0 : i32
    return %arg0, %c0_i32 : i32, i32
  }
}

</mosaic_0001>

<llo_original>
// kernel: tpu_custom_call.1
$region0: #{tpu_custom_call.1}
  #allocation0 [shape = 'u32[]', space=smem, size = 0x4, offset = 0x4, fixed_abs, tag = 'smem constant byte address 0x4 - core index']
  #allocation1 [shape = 'u32[72,128]{1,0:T(1,128)}', space=vmem, size = 0x9000, scoped, tag = 'internal scratch']
  %s0 = inlined_call_operand.vmem [shape: f32[2,240], index: 0, kind: input, shape index: {}]
  %s1 = inlined_call_operand.hbm [shape: f32[240,1024], index: 1, kind: input, shape index: {}]
  %s2 = inlined_call_operand.vmem [shape: f32[1,256], index: 2, kind: input, shape index: {}]
  %s3 = inlined_call_operand.hbm [shape: f32[256,128], index: 3, kind: input, shape index: {}]
  %s4 = inlined_call_operand.vmem [shape: f32[1,128], index: 4, kind: input, shape index: {}]
  %s5 = inlined_call_operand.vmem [shape: f32[128,5], index: 5, kind: input, shape index: {}]
  %s6 = inlined_call_operand.vmem [shape: f32[1,5], index: 6, kind: input, shape index: {}]
  %s7 = inlined_call_operand.hbm [shape: f32[2,5], index: 7, kind: output, shape index: {}]
  %s8 = sld [smem:[#allocation0]]
  $region46: #{tpu_custom_call.1} parent=0
    _
  %s10 = ssub.s32 1, %s8
  %s11 = scalar_select 0, %s10, %s8
  $region1: #{tpu_custom_call.1} parent=0
    #allocation2 [shape = 'u8[983040]{0}', space=vmem, size = 0xf0000, scoped, tag = 'input window, operand 1, single buffered']
    #allocation3 [shape = 's32[1]{0}', space=sflag, size = 0x4, scoped, tag = 'scoped memory for tpu_custom_call.1']
    #allocation4 [shape = 's32[1]{0}', space=sflag, size = 0x4, scoped, tag = 'scoped memory for tpu_custom_call.1']
    #allocation5 [shape = 'u8[131072]{0}', space=vmem, size = 0x20000, scoped, tag = 'input window, operand 3, single buffered']
    #allocation6 [shape = 's32[1]{0}', space=sflag, size = 0x4, scoped, tag = 'scoped memory for tpu_custom_call.1']
    #allocation7 [shape = 'u8[4096]{0}', space=vmem, size = 0x1000, scoped, tag = 'output window, operand 0, single buffered']
    %12 = vsyncpa [#allocation3], 0
    %13 = vsyncpa [#allocation6], 0
    %14 = vsyncpa [#allocation4], 0
    // Predicated region
    $region2: #{tpu_custom_call.1} parent=1 // pred_check
      _
    $region3: #{tpu_custom_call.1} parent=1 // pred_check_branch
      %16 = sbr.rel (0) target = $region5
    $region4: #{tpu_custom_call.1} parent=1 // pred_region
      _
    $region5: #{tpu_custom_call.1} parent=1 // pred_fallthru
      _
    // Predicated region
    $region6: #{tpu_custom_call.1} parent=1 // pred_check
      _
    $region7: #{tpu_custom_call.1} parent=1 // pred_check_branch
      %18 = sbr.rel (0) target = $region9
    $region8: #{tpu_custom_call.1} parent=1 // pred_region
      %20 = vsyncadd [#allocation3], 0
      %s21 = sshll.u32 %s1, 4
      %s22 = int_to_ptr.hbm [resolvable:$true] %s21
      %s23 = sshll.u32 [#allocation2], 4
      %s24 = int_to_ptr.vmem [resolvable:$true] %s23
      %29 = dma.hbm_to_vmem [thread:$0]  %s22, 30720, %s24, [#allocation3], 1024, 1024, 64
    $region9: #{tpu_custom_call.1} parent=1 // pred_fallthru
      _
    // Predicated region
    $region10: #{tpu_custom_call.1} parent=1 // pred_check
      _
    $region11: #{tpu_custom_call.1} parent=1 // pred_check_branch
      %31 = sbr.rel (0) target = $region13
    $region12: #{tpu_custom_call.1} parent=1 // pred_region
      _
    $region13: #{tpu_custom_call.1} parent=1 // pred_fallthru
      _
    // Predicated region
    $region14: #{tpu_custom_call.1} parent=1 // pred_check
      _
    $region15: #{tpu_custom_call.1} parent=1 // pred_check_branch
      %33 = sbr.rel (0) target = $region17
    $region16: #{tpu_custom_call.1} parent=1 // pred_region
      %35 = vsyncadd [#allocation6], 0
      %s36 = sshll.u32 %s3, 4
      %s37 = int_to_ptr.hbm [resolvable:$true] %s36
      %s38 = sshll.u32 [#allocation5], 4
      %s39 = int_to_ptr.vmem [resolvable:$true] %s38
      %44 = dma.hbm_to_vmem [thread:$0]  %s37, 4096, %s39, [#allocation6], 128, 128, 8
    $region17: #{tpu_custom_call.1} parent=1 // pred_fallthru
      _
    // Predicated region
    $region18: #{tpu_custom_call.1} parent=1 // pred_check
      _
    $region19: #{tpu_custom_call.1} parent=1 // pred_check_branch
      %46 = sbr.rel (0) target = $region21
    $region20: #{tpu_custom_call.1} parent=1 // pred_region
      _
    $region21: #{tpu_custom_call.1} parent=1 // pred_fallthru
      _
    // Predicated region
    $region22: #{tpu_custom_call.1} parent=1 // pred_check
      _
    $region23: #{tpu_custom_call.1} parent=1 // pred_check_branch
      %48 = sbr.rel (0) target = $region25
    $region24: #{tpu_custom_call.1} parent=1 // pred_region
      _
    $region25: #{tpu_custom_call.1} parent=1 // pred_fallthru
      _
    // Predicated region
    $region26: #{tpu_custom_call.1} parent=1 // pred_check
      _
    $region27: #{tpu_custom_call.1} parent=1 // pred_check_branch
      %50 = sbr.rel (0) target = $region29
    $region28: #{tpu_custom_call.1} parent=1 // pred_region
      _
    $region29: #{tpu_custom_call.1} parent=1 // pred_fallthru
      _
    // Predicated region
    $region30: #{tpu_custom_call.1} parent=1 // pred_check
      _
    $region31: #{tpu_custom_call.1} parent=1 // pred_check_branch
      %52 = sbr.rel (0) target = $region33
    $region32: #{tpu_custom_call.1} parent=1 // pred_region
      %54 = dma.done [#allocation3], 30720
    $region33: #{tpu_custom_call.1} parent=1 // pred_fallthru
      _
    // Predicated region
    $region34: #{tpu_custom_call.1} parent=1 // pred_check
      _
    $region35: #{tpu_custom_call.1} parent=1 // pred_check_branch
      %56 = sbr.rel (0) target = $region37
    $region36: #{tpu_custom_call.1} parent=1 // pred_region
      %58 = dma.done [#allocation6], 4096
    $region37: #{tpu_custom_call.1} parent=1 // pred_fallthru
      _
    %v59 = vld [vmem:[%s0] sm:$0xf]
    %v60 = vld [vmem:[%s0 + $0x4] sm:$0xf]
    %v61 = vld [vmem:[%s0 + $0x8] sm:$0xf]
    %v62 = vld [vmem:[%s0 + $0xc] sm:$0xf]
    %v63 = vld [vmem:[#allocation2] sm:$0xff]
    %v64 = vld [vmem:[#allocation2 + $0x8] sm:$0xff]
    %v65 = vld [vmem:[#allocation2 + $0x10] sm:$0xff]
    %v66 = vld [vmem:[#allocation2 + $0x18] sm:$0xff]
    %v67 = vld [vmem:[#allocation2 + $0x20] sm:$0xff]
    %v68 = vld [vmem:[#allocation2 + $0x28] sm:$0xff]
    %v69 = vld [vmem:[#allocation2 + $0x30] sm:$0xff]
    %v70 = vld [vmem:[#allocation2 + $0x38] sm:$0xff]
    %v71 = vld [vmem:[#allocation2 + $0x40] sm:$0xff]
    %v72 = vld [vmem:[#allocation2 + $0x48] sm:$0xff]
    %v73 = vld [vmem:[#allocation2 + $0x50] sm:$0xff]
    %v74 = vld [vmem:[#allocation2 + $0x58] sm:$0xff]
    %v75 = vld [vmem:[#allocation2 + $0x60] sm:$0xff]
    %v76 = vld [vmem:[#allocation2 + $0x68] sm:$0xff]
    %v77 = vld [vmem:[#allocation2 + $0x70] sm:$0xff]
    %v78 = vld [vmem:[#allocation2 + $0x78] sm:$0xff]
    %v79 = vld [vmem:[#allocation2 + $0x80] sm:$0xff]
    %v80 = vld [vmem:[#allocation2 + $0x88] sm:$0xff]
    %v81 = vld [vmem:[#allocation2 + $0x90] sm:$0xff]
    %v82 = vld [vmem:[#allocation2 + $0x98] sm:$0xff]
    %v83 = vld [vmem:[#allocation2 + $0xa0] sm:$0xff]
    %v84 = vld [vmem:[#allocation2 + $0xa8] sm:$0xff]
    %v85 = vld [vmem:[#allocation2 + $0xb0] sm:$0xff]
    %v86 = vld [vmem:[#allocation2 + $0xb8] sm:$0xff]
    %v87 = vld [vmem:[#allocation2 + $0xc0] sm:$0xff]
    %v88 = vld [vmem:[#allocation2 + $0xc8] sm:$0xff]
    %v89 = vld [vmem:[#allocation2 + $0xd0] sm:$0xff]
    %v90 = vld [vmem:[#allocation2 + $0xd8] sm:$0xff]
    %v91 = vld [vmem:[#allocation2 + $0xe0] sm:$0xff]
    %v92 = vld [vmem:[#allocation2 + $0xe8] sm:$0xff]
    %v93 = vld [vmem:[#allocation2 + $0xf0] sm:$0xff]
    %v94 = vld [vmem:[#allocation2 + $0xf8] sm:$0xff]
    %v95 = vld [vmem:[#allocation2 + $0x100] sm:$0xff]
    %v96 = vld [vmem:[#allocation2 + $0x108] sm:$0xff]
    %v97 = vld [vmem:[#allocation2 + $0x110] sm:$0xff]
    %v98 = vld [vmem:[#allocation2 + $0x118] sm:$0xff]
    %v99 = vld [vmem:[#allocation2 + $0x120] sm:$0xff]
    %v100 = vld [vmem:[#allocation2 + $0x128] sm:$0xff]
    %v101 = vld [vmem:[#allocation2 + $0x130] sm:$0xff]
    %v102 = vld [vmem:[#allocation2 + $0x138] sm:$0xff]
    %v103 = vld [vmem:[#allocation2 + $0x140] sm:$0xff]
    %v104 = vld [vmem:[#allocation2 + $0x148] sm:$0xff]
    %v105 = vld [vmem:[#allocation2 + $0x150] sm:$0xff]
    %v106 = vld [vmem:[#allocation2 + $0x158] sm:$0xff]
    %v107 = vld [vmem:[#allocation2 + $0x160] sm:$0xff]
    %v108 = vld [vmem:[#allocation2 + $0x168] sm:$0xff]
    %v109 = vld [vmem:[#allocation2 + $0x170] sm:$0xff]
    %v110 = vld [vmem:[#allocation2 + $0x178] sm:$0xff]
    %v111 = vld [vmem:[#allocation2 + $0x180] sm:$0xff]
    %v112 = vld [vmem:[#allocation2 + $0x188] sm:$0xff]
    %v113 = vld [vmem:[#allocation2 + $0x190] sm:$0xff]
    %v114 = vld [vmem:[#allocation2 + $0x198] sm:$0xff]
    %v115 = vld [vmem:[#allocation2 + $0x1a0] sm:$0xff]
    %v116 = vld [vmem:[#allocation2 + $0x1a8] sm:$0xff]
    %v117 = vld [vmem:[#allocation2 + $0x1b0] sm:$0xff]
    %v118 = vld [vmem:[#allocation2 + $0x1b8] sm:$0xff]
    %v119 = vld [vmem:[#allocation2 + $0x1c0] sm:$0xff]
    %v120 = vld [vmem:[#allocation2 + $0x1c8] sm:$0xff]
    %v121 = vld [vmem:[#allocation2 + $0x1d0] sm:$0xff]
    %v122 = vld [vmem:[#allocation2 + $0x1d8] sm:$0xff]
    %v123 = vld [vmem:[#allocation2 + $0x1e0] sm:$0xff]
    %v124 = vld [vmem:[#allocation2 + $0x1e8] sm:$0xff]
    %v125 = vld [vmem:[#allocation2 + $0x1f0] sm:$0xff]
    %v126 = vld [vmem:[#allocation2 + $0x1f8] sm:$0xff]
    %v127 = vld [vmem:[#allocation2 + $0x200] sm:$0xff]
    %v128 = vld [vmem:[#allocation2 + $0x208] sm:$0xff]
    %v129 = vld [vmem:[#allocation2 + $0x210] sm:$0xff]
    %v130 = vld [vmem:[#allocation2 + $0x218] sm:$0xff]
    %v131 = vld [vmem:[#allocation2 + $0x220] sm:$0xff]
    %v132 = vld [vmem:[#allocation2 + $0x228] sm:$0xff]
    %v133 = vld [vmem:[#allocation2 + $0x230] sm:$0xff]
    %v134 = vld [vmem:[#allocation2 + $0x238] sm:$0xff]
    %v135 = vld [vmem:[#allocation2 + $0x240] sm:$0xff]
    %v136 = vld [vmem:[#allocation2 + $0x248] sm:$0xff]
    %v137 = vld [vmem:[#allocation2 + $0x250] sm:$0xff]
    %v138 = vld [vmem:[#allocation2 + $0x258] sm:$0xff]
    %v139 = vld [vmem:[#allocation2 + $0x260] sm:$0xff]
    %v140 = vld [vmem:[#allocation2 + $0x268] sm:$0xff]
    %v141 = vld [vmem:[#allocation2 + $0x270] sm:$0xff]
    %v142 = vld [vmem:[#allocation2 + $0x278] sm:$0xff]
    %v143 = vld [vmem:[#allocation2 + $0x280] sm:$0xff]
    %v144 = vld [vmem:[#allocation2 + $0x288] sm:$0xff]
    %v145 = vld [vmem:[#allocation2 + $0x290] sm:$0xff]
    %v146 = vld [vmem:[#allocation2 + $0x298] sm:$0xff]
    %v147 = vld [vmem:[#allocation2 + $0x2a0] sm:$0xff]
    %v148 = vld [vmem:[#allocation2 + $0x2a8] sm:$0xff]
    %v149 = vld [vmem:[#allocation2 + $0x2b0] sm:$0xff]
    %v150 = vld [vmem:[#allocation2 + $0x2b8] sm:$0xff]
    %v151 = vld [vmem:[#allocation2 + $0x2c0] sm:$0xff]
    %v152 = vld [vmem:[#allocation2 + $0x2c8] sm:$0xff]
    %v153 = vld [vmem:[#allocation2 + $0x2d0] sm:$0xff]
    %v154 = vld [vmem:[#allocation2 + $0x2d8] sm:$0xff]
    %v155 = vld [vmem:[#allocation2 + $0x2e0] sm:$0xff]
    %v156 = vld [vmem:[#allocation2 + $0x2e8] sm:$0xff]
    %v157 = vld [vmem:[#allocation2 + $0x2f0] sm:$0xff]
    %v158 = vld [vmem:[#allocation2 + $0x2f8] sm:$0xff]
    %v159 = vld [vmem:[#allocation2 + $0x300] sm:$0xff]
    %v160 = vld [vmem:[#allocation2 + $0x308] sm:$0xff]
    %v161 = vld [vmem:[#allocation2 + $0x310] sm:$0xff]
    %v162 = vld [vmem:[#allocation2 + $0x318] sm:$0xff]
    %v163 = vld [vmem:[#allocation2 + $0x320] sm:$0xff]
    %v164 = vld [vmem:[#allocation2 + $0x328] sm:$0xff]
    %v165 = vld [vmem:[#allocation2 + $0x330] sm:$0xff]
    %v166 = vld [vmem:[#allocation2 + $0x338] sm:$0xff]
    %v167 = vld [vmem:[#allocation2 + $0x340] sm:$0xff]
    %v168 = vld [vmem:[#allocation2 + $0x348] sm:$0xff]
    %v169 = vld [vmem:[#allocation2 + $0x350] sm:$0xff]
    %v170 = vld [vmem:[#allocation2 + $0x358] sm:$0xff]
    %v171 = vld [vmem:[#allocation2 + $0x360] sm:$0xff]
    %v172 = vld [vmem:[#allocation2 + $0x368] sm:$0xff]
    %v173 = vld [vmem:[#allocation2 + $0x370] sm:$0xff]
    %v174 = vld [vmem:[#allocation2 + $0x378] sm:$0xff]
    %v175 = vld [vmem:[#allocation2 + $0x380] sm:$0xff]
    %v176 = vld [vmem:[#allocation2 + $0x388] sm:$0xff]
    %v177 = vld [vmem:[#allocation2 + $0x390] sm:$0xff]
    %v178 = vld [vmem:[#allocation2 + $0x398] sm:$0xff]
    %v179 = vld [vmem:[#allocation2 + $0x3a0] sm:$0xff]
    %v180 = vld [vmem:[#allocation2 + $0x3a8] sm:$0xff]
    %v181 = vld [vmem:[#allocation2 + $0x3b0] sm:$0xff]
    %v182 = vld [vmem:[#allocation2 + $0x3b8] sm:$0xff]
    %v183 = vld [vmem:[#allocation2 + $0x3c0] sm:$0xff]
    %v184 = vld [vmem:[#allocation2 + $0x3c8] sm:$0xff]
    %v185 = vld [vmem:[#allocation2 + $0x3d0] sm:$0xff]
    %v186 = vld [vmem:[#allocation2 + $0x3d8] sm:$0xff]
    %v187 = vld [vmem:[#allocation2 + $0x3e0] sm:$0xff]
    %v188 = vld [vmem:[#allocation2 + $0x3e8] sm:$0xff]
    %v189 = vld [vmem:[#allocation2 + $0x3f0] sm:$0xff]
    %v190 = vld [vmem:[#allocation2 + $0x3f8] sm:$0xff]
    %v191 = vld [vmem:[#allocation2 + $0x400] sm:$0xff]
    %v192 = vld [vmem:[#allocation2 + $0x408] sm:$0xff]
    %v193 = vld [vmem:[#allocation2 + $0x410] sm:$0xff]
    %v194 = vld [vmem:[#allocation2 + $0x418] sm:$0xff]
    %v195 = vld [vmem:[#allocation2 + $0x420] sm:$0xff]
    %v196 = vld [vmem:[#allocation2 + $0x428] sm:$0xff]
    %v197 = vld [vmem:[#allocation2 + $0x430] sm:$0xff]
    %v198 = vld [vmem:[#allocation2 + $0x438] sm:$0xff]
    %v199 = vld [vmem:[#allocation2 + $0x440] sm:$0xff]
    %v200 = vld [vmem:[#allocation2 + $0x448] sm:$0xff]
    %v201 = vld [vmem:[#allocation2 + $0x450] sm:$0xff]
    %v202 = vld [vmem:[#allocation2 + $0x458] sm:$0xff]
    %v203 = vld [vmem:[#allocation2 + $0x460] sm:$0xff]
    %v204 = vld [vmem:[#allocation2 + $0x468] sm:$0xff]
    %v205 = vld [vmem:[#allocation2 + $0x470] sm:$0xff]
    %v206 = vld [vmem:[#allocation2 + $0x478] sm:$0xff]
    %v207 = vld [vmem:[#allocation2 + $0x480] sm:$0xff]
    %v208 = vld [vmem:[#allocation2 + $0x488] sm:$0xff]
    %v209 = vld [vmem:[#allocation2 + $0x490] sm:$0xff]
    %v210 = vld [vmem:[#allocation2 + $0x498] sm:$0xff]
    %v211 = vld [vmem:[#allocation2 + $0x4a0] sm:$0xff]
    %v212 = vld [vmem:[#allocation2 + $0x4a8] sm:$0xff]
    %v213 = vld [vmem:[#allocation2 + $0x4b0] sm:$0xff]
    %v214 = vld [vmem:[#allocation2 + $0x4b8] sm:$0xff]
    %v215 = vld [vmem:[#allocation2 + $0x4c0] sm:$0xff]
    %v216 = vld [vmem:[#allocation2 + $0x4c8] sm:$0xff]
    %v217 = vld [vmem:[#allocation2 + $0x4d0] sm:$0xff]
    %v218 = vld [vmem:[#allocation2 + $0x4d8] sm:$0xff]
    %v219 = vld [vmem:[#allocation2 + $0x4e0] sm:$0xff]
    %v220 = vld [vmem:[#allocation2 + $0x4e8] sm:$0xff]
    %v221 = vld [vmem:[#allocation2 + $0x4f0] sm:$0xff]
    %v222 = vld [vmem:[#allocation2 + $0x4f8] sm:$0xff]
    %v223 = vld [vmem:[#allocation2 + $0x500] sm:$0xff]
    %v224 = vld [vmem:[#allocation2 + $0x508] sm:$0xff]
    %v225 = vld [vmem:[#allocation2 + $0x510] sm:$0xff]
    %v226 = vld [vmem:[#allocation2 + $0x518] sm:$0xff]
    %v227 = vld [vmem:[#allocation2 + $0x520] sm:$0xff]
    %v228 = vld [vmem:[#allocation2 + $0x528] sm:$0xff]
    %v229 = vld [vmem:[#allocation2 + $0x530] sm:$0xff]
    %v230 = vld [vmem:[#allocation2 + $0x538] sm:$0xff]
    %v231 = vld [vmem:[#allocation2 + $0x540] sm:$0xff]
    %v232 = vld [vmem:[#allocation2 + $0x548] sm:$0xff]
    %v233 = vld [vmem:[#allocation2 + $0x550] sm:$0xff]
    %v234 = vld [vmem:[#allocation2 + $0x558] sm:$0xff]
    %v235 = vld [vmem:[#allocation2 + $0x560] sm:$0xff]
    %v236 = vld [vmem:[#allocation2 + $0x568] sm:$0xff]
    %v237 = vld [vmem:[#allocation2 + $0x570] sm:$0xff]
    %v238 = vld [vmem:[#allocation2 + $0x578] sm:$0xff]
    %v239 = vld [vmem:[#allocation2 + $0x580] sm:$0xff]
    %v240 = vld [vmem:[#allocation2 + $0x588] sm:$0xff]
    %v241 = vld [vmem:[#allocation2 + $0x590] sm:$0xff]
    %v242 = vld [vmem:[#allocation2 + $0x598] sm:$0xff]
    %v243 = vld [vmem:[#allocation2 + $0x5a0] sm:$0xff]
    %v244 = vld [vmem:[#allocation2 + $0x5a8] sm:$0xff]
    %v245 = vld [vmem:[#allocation2 + $0x5b0] sm:$0xff]
    %v246 = vld [vmem:[#allocation2 + $0x5b8] sm:$0xff]
    %v247 = vld [vmem:[#allocation2 + $0x5c0] sm:$0xff]
    %v248 = vld [vmem:[#allocation2 + $0x5c8] sm:$0xff]
    %v249 = vld [vmem:[#allocation2 + $0x5d0] sm:$0xff]
    %v250 = vld [vmem:[#allocation2 + $0x5d8] sm:$0xff]
    %v251 = vld [vmem:[#allocation2 + $0x5e0] sm:$0xff]
    %v252 = vld [vmem:[#allocation2 + $0x5e8] sm:$0xff]
    %v253 = vld [vmem:[#allocation2 + $0x5f0] sm:$0xff]
    %v254 = vld [vmem:[#allocation2 + $0x5f8] sm:$0xff]
    %v255 = vld [vmem:[#allocation2 + $0x600] sm:$0xff]
    %v256 = vld [vmem:[#allocation2 + $0x608] sm:$0xff]
    %v257 = vld [vmem:[#allocation2 + $0x610] sm:$0xff]
    %v258 = vld [vmem:[#allocation2 + $0x618] sm:$0xff]
    %v259 = vld [vmem:[#allocation2 + $0x620] sm:$0xff]
    %v260 = vld [vmem:[#allocation2 + $0x628] sm:$0xff]
    %v261 = vld [vmem:[#allocation2 + $0x630] sm:$0xff]
    %v262 = vld [vmem:[#allocation2 + $0x638] sm:$0xff]
    %v263 = vld [vmem:[#allocation2 + $0x640] sm:$0xff]
    %v264 = vld [vmem:[#allocation2 + $0x648] sm:$0xff]
    %v265 = vld [vmem:[#allocation2 + $0x650] sm:$0xff]
    %v266 = vld [vmem:[#allocation2 + $0x658] sm:$0xff]
    %v267 = vld [vmem:[#allocation2 + $0x660] sm:$0xff]
    %v268 = vld [vmem:[#allocation2 + $0x668] sm:$0xff]
    %v269 = vld [vmem:[#allocation2 + $0x670] sm:$0xff]
    %v270 = vld [vmem:[#allocation2 + $0x678] sm:$0xff]
    %v271 = vld [vmem:[#allocation2 + $0x680] sm:$0xff]
    %v272 = vld [vmem:[#allocation2 + $0x688] sm:$0xff]
    %v273 = vld [vmem:[#allocation2 + $0x690] sm:$0xff]
    %v274 = vld [vmem:[#allocation2 + $0x698] sm:$0xff]
    %v275 = vld [vmem:[#allocation2 + $0x6a0] sm:$0xff]
    %v276 = vld [vmem:[#allocation2 + $0x6a8] sm:$0xff]
    %v277 = vld [vmem:[#allocation2 + $0x6b0] sm:$0xff]
    %v278 = vld [vmem:[#allocation2 + $0x6b8] sm:$0xff]
    %v279 = vld [vmem:[#allocation2 + $0x6c0] sm:$0xff]
    %v280 = vld [vmem:[#allocation2 + $0x6c8] sm:$0xff]
    %v281 = vld [vmem:[#allocation2 + $0x6d0] sm:$0xff]
    %v282 = vld [vmem:[#allocation2 + $0x6d8] sm:$0xff]
    %v283 = vld [vmem:[#allocation2 + $0x6e0] sm:$0xff]
    %v284 = vld [vmem:[#allocation2 + $0x6e8] sm:$0xff]
    %v285 = vld [vmem:[#allocation2 + $0x6f0] sm:$0xff]
    %v286 = vld [vmem:[#allocation2 + $0x6f8] sm:$0xff]
    %v287 = vld [vmem:[#allocation2 + $0x700] sm:$0xff]
    %v288 = vld [vmem:[#allocation2 + $0x708] sm:$0xff]
    %v289 = vld [vmem:[#allocation2 + $0x710] sm:$0xff]
    %v290 = vld [vmem:[#allocation2 + $0x718] sm:$0xff]
    %v291 = vld [vmem:[#allocation2 + $0x720] sm:$0xff]
    %v292 = vld [vmem:[#allocation2 + $0x728] sm:$0xff]
    %v293 = vld [vmem:[#allocation2 + $0x730] sm:$0xff]
    %v294 = vld [vmem:[#allocation2 + $0x738] sm:$0xff]
    %v295 = vld [vmem:[#allocation2 + $0x740] sm:$0xff]
    %v296 = vld [vmem:[#allocation2 + $0x748] sm:$0xff]
    %v297 = vld [vmem:[#allocation2 + $0x750] sm:$0xff]
    %v298 = vld [vmem:[#allocation2 + $0x758] sm:$0xff]
    %v299 = vld [vmem:[#allocation2 + $0x760] sm:$0xff]
    %v300 = vld [vmem:[#allocation2 + $0x768] sm:$0xff]
    %v301 = vld [vmem:[#allocation2 + $0x770] sm:$0xff]
    %v302 = vld [vmem:[#allocation2 + $0x778] sm:$0xff]
    %307 = vst [vmem:[#allocation1] ss:$4 sm:$0xff] %v59
    %s308 = scalar_lea.vmem [#allocation1], 1
    %309 = vst [vmem:[%s308] ss:$4 sm:$0xff] %v60
    %s310 = scalar_lea.vmem [#allocation1], 2
    %311 = vst [vmem:[%s310] ss:$4 sm:$0xff] %v61
    %s312 = scalar_lea.vmem [#allocation1], 3
    %313 = vst [vmem:[%s312] ss:$4 sm:$0xff] %v62
    %v314 = vld.sshfl [vmem:[#allocation1] sm:$0xff pattern:$0x73625140]
    %v315 = vld.sshfl [vmem:[#allocation1 + $0x8] sm:$0xff pattern:$0x73625140]
    %vm317 = vcmask 916480
    %v318 = vsel %vm317, %v315, 0
    %320 = vmatpush.msra.mxu0 %v183
    %321 = vmatpush.msra.mxu0 %v175
    %322 = vmatpush.msra.mxu0 %v167
    %323 = vmatpush.msra.mxu0 %v159
    %324 = vmatpush.msra.mxu0 %v151
    %325 = vmatpush.msra.mxu0 %v143
    %326 = vmatpush.msra.mxu0 %v135
    %327 = vmatpush.msra.mxu0 %v127
    %328 = vmatpush.msra.mxu0 %v119
    %329 = vmatpush.msra.mxu0 %v111
    %330 = vmatpush.msra.mxu0 %v103
    %331 = vmatpush.msra.mxu0 %v95
    %332 = vmatpush.msra.mxu0 %v87
    %333 = vmatpush.msra.mxu0 %v79
    %334 = vmatpush.msra.mxu0 %v71
    %335 = vmatpush.msra.mxu0 %v63
    %336 = vmatmul.f32.gmra.mxu0 %v314
    %v337 = vpop.f32.mrf.mxu0
    %v338 = vadd.f32 0.0, %v337
    %339 = vdwg.mxu0
    %340 = vmatpush.msra.mxu0 0.0
    %341 = vmatpush.msra.mxu0 0.0
    %342 = vmatpush.msra.mxu0 %v295
    %343 = vmatpush.msra.mxu0 %v287
    %344 = vmatpush.msra.mxu0 %v279
    %345 = vmatpush.msra.mxu0 %v271
    %346 = vmatpush.msra.mxu0 %v263
    %347 = vmatpush.msra.mxu0 %v255
    %348 = vmatpush.msra.mxu0 %v247
    %349 = vmatpush.msra.mxu0 %v239
    %350 = vmatpush.msra.mxu0 %v231
    %351 = vmatpush.msra.mxu0 %v223
    %352 = vmatpush.msra.mxu0 %v215
    %353 = vmatpush.msra.mxu0 %v207
    %354 = vmatpush.msra.mxu0 %v199
    %355 = vmatpush.msra.mxu0 %v191
    %356 = vmatmul.f32.gmra.mxu0 %v318
    %v357 = vpop.f32.mrf.mxu0
    %v358 = vadd.f32 %v338, %v357
    %359 = vdwg.mxu0
    %360 = vmatpush.msra.mxu0 %v184
    %361 = vmatpush.msra.mxu0 %v176
    %362 = vmatpush.msra.mxu0 %v168
    %363 = vmatpush.msra.mxu0 %v160
    %364 = vmatpush.msra.mxu0 %v152
    %365 = vmatpush.msra.mxu0 %v144
    %366 = vmatpush.msra.mxu0 %v136
    %367 = vmatpush.msra.mxu0 %v128
    %368 = vmatpush.msra.mxu0 %v120
    %369 = vmatpush.msra.mxu0 %v112
    %370 = vmatpush.msra.mxu0 %v104
    %371 = vmatpush.msra.mxu0 %v96
    %372 = vmatpush.msra.mxu0 %v88
    %373 = vmatpush.msra.mxu0 %v80
    %374 = vmatpush.msra.mxu0 %v72
    %375 = vmatpush.msra.mxu0 %v64
    %376 = vmatmul.f32.gmra.mxu0 %v314
    %v377 = vpop.f32.mrf.mxu0
    %v378 = vadd.f32 0.0, %v377
    %379 = vdwg.mxu0
    %380 = vmatpush.msra.mxu0 0.0
    %381 = vmatpush.msra.mxu0 0.0
    %382 = vmatpush.msra.mxu0 %v296
    %383 = vmatpush.msra.mxu0 %v288
    %384 = vmatpush.msra.mxu0 %v280
    %385 = vmatpush.msra.mxu0 %v272
    %386 = vmatpush.msra.mxu0 %v264
    %387 = vmatpush.msra.mxu0 %v256
    %388 = vmatpush.msra.mxu0 %v248
    %389 = vmatpush.msra.mxu0 %v240
    %390 = vmatpush.msra.mxu0 %v232
    %391 = vmatpush.msra.mxu0 %v224
    %392 = vmatpush.msra.mxu0 %v216
    %393 = vmatpush.msra.mxu0 %v208
    %394 = vmatpush.msra.mxu0 %v200
    %395 = vmatpush.msra.mxu0 %v192
    %396 = vmatmul.f32.gmra.mxu0 %v318
    %v397 = vpop.f32.mrf.mxu0
    %v398 = vadd.f32 %v378, %v397
    %399 = vdwg.mxu0
    %400 = vmatpush.msra.mxu0 %v185
    %401 = vmatpush.msra.mxu0 %v177
    %402 = vmatpush.msra.mxu0 %v169
    %403 = vmatpush.msra.mxu0 %v161
    %404 = vmatpush.msra.mxu0 %v153
    %405 = vmatpush.msra.mxu0 %v145
    %406 = vmatpush.msra.mxu0 %v137
    %407 = vmatpush.msra.mxu0 %v129
    %408 = vmatpush.msra.mxu0 %v121
    %409 = vmatpush.msra.mxu0 %v113
    %410 = vmatpush.msra.mxu0 %v105
    %411 = vmatpush.msra.mxu0 %v97
    %412 = vmatpush.msra.mxu0 %v89
    %413 = vmatpush.msra.mxu0 %v81
    %414 = vmatpush.msra.mxu0 %v73
    %415 = vmatpush.msra.mxu0 %v65
    %416 = vmatmul.f32.gmra.mxu0 %v314
    %v417 = vpop.f32.mrf.mxu0
    %v418 = vadd.f32 0.0, %v417
    %419 = vdwg.mxu0
    %420 = vmatpush.msra.mxu0 0.0
    %421 = vmatpush.msra.mxu0 0.0
    %422 = vmatpush.msra.mxu0 %v297
    %423 = vmatpush.msra.mxu0 %v289
    %424 = vmatpush.msra.mxu0 %v281
    %425 = vmatpush.msra.mxu0 %v273
    %426 = vmatpush.msra.mxu0 %v265
    %427 = vmatpush.msra.mxu0 %v257
    %428 = vmatpush.msra.mxu0 %v249
    %429 = vmatpush.msra.mxu0 %v241
    %430 = vmatpush.msra.mxu0 %v233
    %431 = vmatpush.msra.mxu0 %v225
    %432 = vmatpush.msra.mxu0 %v217
    %433 = vmatpush.msra.mxu0 %v209
    %434 = vmatpush.msra.mxu0 %v201
    %435 = vmatpush.msra.mxu0 %v193
    %436 = vmatmul.f32.gmra.mxu0 %v318
    %v437 = vpop.f32.mrf.mxu0
    %v438 = vadd.f32 %v418, %v437
    %439 = vdwg.mxu0
    %440 = vmatpush.msra.mxu0 %v186
    %441 = vmatpush.msra.mxu0 %v178
    %442 = vmatpush.msra.mxu0 %v170
    %443 = vmatpush.msra.mxu0 %v162
    %444 = vmatpush.msra.mxu0 %v154
    %445 = vmatpush.msra.mxu0 %v146
    %446 = vmatpush.msra.mxu0 %v138
    %447 = vmatpush.msra.mxu0 %v130
    %448 = vmatpush.msra.mxu0 %v122
    %449 = vmatpush.msra.mxu0 %v114
    %450 = vmatpush.msra.mxu0 %v106
    %451 = vmatpush.msra.mxu0 %v98
    %452 = vmatpush.msra.mxu0 %v90
    %453 = vmatpush.msra.mxu0 %v82
    %454 = vmatpush.msra.mxu0 %v74
    %455 = vmatpush.msra.mxu0 %v66
    %456 = vmatmul.f32.gmra.mxu0 %v314
    %v457 = vpop.f32.mrf.mxu0
    %v458 = vadd.f32 0.0, %v457
    %459 = vdwg.mxu0
    %460 = vmatpush.msra.mxu0 0.0
    %461 = vmatpush.msra.mxu0 0.0
    %462 = vmatpush.msra.mxu0 %v298
    %463 = vmatpush.msra.mxu0 %v290
    %464 = vmatpush.msra.mxu0 %v282
    %465 = vmatpush.msra.mxu0 %v274
    %466 = vmatpush.msra.mxu0 %v266
    %467 = vmatpush.msra.mxu0 %v258
    %468 = vmatpush.msra.mxu0 %v250
    %469 = vmatpush.msra.mxu0 %v242
    %470 = vmatpush.msra.mxu0 %v234
    %471 = vmatpush.msra.mxu0 %v226
    %472 = vmatpush.msra.mxu0 %v218
    %473 = vmatpush.msra.mxu0 %v210
    %474 = vmatpush.msra.mxu0 %v202
    %475 = vmatpush.msra.mxu0 %v194
    %476 = vmatmul.f32.gmra.mxu0 %v318
    %v477 = vpop.f32.mrf.mxu0
    %v478 = vadd.f32 %v458, %v477
    %479 = vdwg.mxu0
    %480 = vmatpush.msra.mxu0 %v187
    %481 = vmatpush.msra.mxu0 %v179
    %482 = vmatpush.msra.mxu0 %v171
    %483 = vmatpush.msra.mxu0 %v163
    %484 = vmatpush.msra.mxu0 %v155
    %485 = vmatpush.msra.mxu0 %v147
    %486 = vmatpush.msra.mxu0 %v139
    %487 = vmatpush.msra.mxu0 %v131
    %488 = vmatpush.msra.mxu0 %v123
    %489 = vmatpush.msra.mxu0 %v115
    %490 = vmatpush.msra.mxu0 %v107
    %491 = vmatpush.msra.mxu0 %v99
    %492 = vmatpush.msra.mxu0 %v91
    %493 = vmatpush.msra.mxu0 %v83
    %494 = vmatpush.msra.mxu0 %v75
    %495 = vmatpush.msra.mxu0 %v67
    %496 = vmatmul.f32.gmra.mxu0 %v314
    %v497 = vpop.f32.mrf.mxu0
    %v498 = vadd.f32 0.0, %v497
    %499 = vdwg.mxu0
    %500 = vmatpush.msra.mxu0 0.0
    %501 = vmatpush.msra.mxu0 0.0
    %502 = vmatpush.msra.mxu0 %v299
    %503 = vmatpush.msra.mxu0 %v291
    %504 = vmatpush.msra.mxu0 %v283
    %505 = vmatpush.msra.mxu0 %v275
    %506 = vmatpush.msra.mxu0 %v267
    %507 = vmatpush.msra.mxu0 %v259
    %508 = vmatpush.msra.mxu0 %v251
    %509 = vmatpush.msra.mxu0 %v243
    %510 = vmatpush.msra.mxu0 %v235
    %511 = vmatpush.msra.mxu0 %v227
    %512 = vmatpush.msra.mxu0 %v219
    %513 = vmatpush.msra.mxu0 %v211
    %514 = vmatpush.msra.mxu0 %v203
    %515 = vmatpush.msra.mxu0 %v195
    %516 = vmatmul.f32.gmra.mxu0 %v318
    %v517 = vpop.f32.mrf.mxu0
    %v518 = vadd.f32 %v498, %v517
    %519 = vdwg.mxu0
    %520 = vmatpush.msra.mxu0 %v188
    %521 = vmatpush.msra.mxu0 %v180
    %522 = vmatpush.msra.mxu0 %v172
    %523 = vmatpush.msra.mxu0 %v164
    %524 = vmatpush.msra.mxu0 %v156
    %525 = vmatpush.msra.mxu0 %v148
    %526 = vmatpush.msra.mxu0 %v140
    %527 = vmatpush.msra.mxu0 %v132
    %528 = vmatpush.msra.mxu0 %v124
    %529 = vmatpush.msra.mxu0 %v116
    %530 = vmatpush.msra.mxu0 %v108
    %531 = vmatpush.msra.mxu0 %v100
    %532 = vmatpush.msra.mxu0 %v92
    %533 = vmatpush.msra.mxu0 %v84
    %534 = vmatpush.msra.mxu0 %v76
    %535 = vmatpush.msra.mxu0 %v68
    %536 = vmatmul.f32.gmra.mxu0 %v314
    %v537 = vpop.f32.mrf.mxu0
    %v538 = vadd.f32 0.0, %v537
    %539 = vdwg.mxu0
    %540 = vmatpush.msra.mxu0 0.0
    %541 = vmatpush.msra.mxu0 0.0
    %542 = vmatpush.msra.mxu0 %v300
    %543 = vmatpush.msra.mxu0 %v292
    %544 = vmatpush.msra.mxu0 %v284
    %545 = vmatpush.msra.mxu0 %v276
    %546 = vmatpush.msra.mxu0 %v268
    %547 = vmatpush.msra.mxu0 %v260
    %548 = vmatpush.msra.mxu0 %v252
    %549 = vmatpush.msra.mxu0 %v244
    %550 = vmatpush.msra.mxu0 %v236
    %551 = vmatpush.msra.mxu0 %v228
    %552 = vmatpush.msra.mxu0 %v220
    %553 = vmatpush.msra.mxu0 %v212
    %554 = vmatpush.msra.mxu0 %v204
    %555 = vmatpush.msra.mxu0 %v196
    %556 = vmatmul.f32.gmra.mxu0 %v318
    %v557 = vpop.f32.mrf.mxu0
    %v558 = vadd.f32 %v538, %v557
    %559 = vdwg.mxu0
    %560 = vmatpush.msra.mxu0 %v189
    %561 = vmatpush.msra.mxu0 %v181
    %562 = vmatpush.msra.mxu0 %v173
    %563 = vmatpush.msra.mxu0 %v165
    %564 = vmatpush.msra.mxu0 %v157
    %565 = vmatpush.msra.mxu0 %v149
    %566 = vmatpush.msra.mxu0 %v141
    %567 = vmatpush.msra.mxu0 %v133
    %568 = vmatpush.msra.mxu0 %v125
    %569 = vmatpush.msra.mxu0 %v117
    %570 = vmatpush.msra.mxu0 %v109
    %571 = vmatpush.msra.mxu0 %v101
    %572 = vmatpush.msra.mxu0 %v93
    %573 = vmatpush.msra.mxu0 %v85
    %574 = vmatpush.msra.mxu0 %v77
    %575 = vmatpush.msra.mxu0 %v69
    %576 = vmatmul.f32.gmra.mxu0 %v314
    %v577 = vpop.f32.mrf.mxu0
    %v578 = vadd.f32 0.0, %v577
    %579 = vdwg.mxu0
    %580 = vmatpush.msra.mxu0 0.0
    %581 = vmatpush.msra.mxu0 0.0
    %582 = vmatpush.msra.mxu0 %v301
    %583 = vmatpush.msra.mxu0 %v293
    %584 = vmatpush.msra.mxu0 %v285
    %585 = vmatpush.msra.mxu0 %v277
    %586 = vmatpush.msra.mxu0 %v269
    %587 = vmatpush.msra.mxu0 %v261
    %588 = vmatpush.msra.mxu0 %v253
    %589 = vmatpush.msra.mxu0 %v245
    %590 = vmatpush.msra.mxu0 %v237
    %591 = vmatpush.msra.mxu0 %v229
    %592 = vmatpush.msra.mxu0 %v221
    %593 = vmatpush.msra.mxu0 %v213
    %594 = vmatpush.msra.mxu0 %v205
    %595 = vmatpush.msra.mxu0 %v197
    %596 = vmatmul.f32.gmra.mxu0 %v318
    %v597 = vpop.f32.mrf.mxu0
    %v598 = vadd.f32 %v578, %v597
    %599 = vdwg.mxu0
    %600 = vmatpush.msra.mxu0 %v190
    %601 = vmatpush.msra.mxu0 %v182
    %602 = vmatpush.msra.mxu0 %v174
    %603 = vmatpush.msra.mxu0 %v166
    %604 = vmatpush.msra.mxu0 %v158
    %605 = vmatpush.msra.mxu0 %v150
    %606 = vmatpush.msra.mxu0 %v142
    %607 = vmatpush.msra.mxu0 %v134
    %608 = vmatpush.msra.mxu0 %v126
    %609 = vmatpush.msra.mxu0 %v118
    %610 = vmatpush.msra.mxu0 %v110
    %611 = vmatpush.msra.mxu0 %v102
    %612 = vmatpush.msra.mxu0 %v94
    %613 = vmatpush.msra.mxu0 %v86
    %614 = vmatpush.msra.mxu0 %v78
    %615 = vmatpush.msra.mxu0 %v70
    %616 = vmatmul.f32.gmra.mxu0 %v314
    %v617 = vpop.f32.mrf.mxu0
    %v618 = vadd.f32 0.0, %v617
    %619 = vdwg.mxu0
    %620 = vmatpush.msra.mxu0 0.0
    %621 = vmatpush.msra.mxu0 0.0
    %622 = vmatpush.msra.mxu0 %v302
    %623 = vmatpush.msra.mxu0 %v294
    %624 = vmatpush.msra.mxu0 %v286
    %625 = vmatpush.msra.mxu0 %v278
    %626 = vmatpush.msra.mxu0 %v270
    %627 = vmatpush.msra.mxu0 %v262
    %628 = vmatpush.msra.mxu0 %v254
    %629 = vmatpush.msra.mxu0 %v246
    %630 = vmatpush.msra.mxu0 %v238
    %631 = vmatpush.msra.mxu0 %v230
    %632 = vmatpush.msra.mxu0 %v222
    %633 = vmatpush.msra.mxu0 %v214
    %634 = vmatpush.msra.mxu0 %v206
    %635 = vmatpush.msra.mxu0 %v198
    %636 = vmatmul.f32.gmra.mxu0 %v318
    %v637 = vpop.f32.mrf.mxu0
    %v638 = vadd.f32 %v618, %v637
    %639 = vdwg.mxu0
    %v640 = vmax.f32 %v358, %v438
    %v641 = vmax.f32 %v398, %v478
    %v642 = vmax.f32 %v518, %v598
    %v643 = vmax.f32 %v558, %v638
    %v644 = vmax.f32 %v640, %v642
    %v645 = vmax.f32 %v641, %v643
    %v646 = vld [vmem:[%s2] sm:$0x3]
    %v648 = vperm.slane %v646, 0
    %v649 = vperm.slane %v646, 1
    %v652 = vadd.f32 %v644, %v648
    %v653 = vadd.f32 %v645, %v649
    %v654 = vmax.f32 %v652, 0.0
    %v655 = vmax.f32 %v653, 0.0
    %v656 = vld [vmem:[#allocation5] sm:$0xff]
    %v657 = vld [vmem:[#allocation5 + $0x8] sm:$0xff]
    %v658 = vld [vmem:[#allocation5 + $0x10] sm:$0xff]
    %v659 = vld [vmem:[#allocation5 + $0x18] sm:$0xff]
    %v660 = vld [vmem:[#allocation5 + $0x20] sm:$0xff]
    %v661 = vld [vmem:[#allocation5 + $0x28] sm:$0xff]
    %v662 = vld [vmem:[#allocation5 + $0x30] sm:$0xff]
    %v663 = vld [vmem:[#allocation5 + $0x38] sm:$0xff]
    %v664 = vld [vmem:[#allocation5 + $0x40] sm:$0xff]
    %v665 = vld [vmem:[#allocation5 + $0x48] sm:$0xff]
    %v666 = vld [vmem:[#allocation5 + $0x50] sm:$0xff]
    %v667 = vld [vmem:[#allocation5 + $0x58] sm:$0xff]
    %v668 = vld [vmem:[#allocation5 + $0x60] sm:$0xff]
    %v669 = vld [vmem:[#allocation5 + $0x68] sm:$0xff]
    %v670 = vld [vmem:[#allocation5 + $0x70] sm:$0xff]
    %v671 = vld [vmem:[#allocation5 + $0x78] sm:$0xff]
    %v672 = vld [vmem:[#allocation5 + $0x80] sm:$0xff]
    %v673 = vld [vmem:[#allocation5 + $0x88] sm:$0xff]
    %v674 = vld [vmem:[#allocation5 + $0x90] sm:$0xff]
    %v675 = vld [vmem:[#allocation5 + $0x98] sm:$0xff]
    %v676 = vld [vmem:[#allocation5 + $0xa0] sm:$0xff]
    %v677 = vld [vmem:[#allocation5 + $0xa8] sm:$0xff]
    %v678 = vld [vmem:[#allocation5 + $0xb0] sm:$0xff]
    %v679 = vld [vmem:[#allocation5 + $0xb8] sm:$0xff]
    %v680 = vld [vmem:[#allocation5 + $0xc0] sm:$0xff]
    %v681 = vld [vmem:[#allocation5 + $0xc8] sm:$0xff]
    %v682 = vld [vmem:[#allocation5 + $0xd0] sm:$0xff]
    %v683 = vld [vmem:[#allocation5 + $0xd8] sm:$0xff]
    %v684 = vld [vmem:[#allocation5 + $0xe0] sm:$0xff]
    %v685 = vld [vmem:[#allocation5 + $0xe8] sm:$0xff]
    %v686 = vld [vmem:[#allocation5 + $0xf0] sm:$0xff]
    %v687 = vld [vmem:[#allocation5 + $0xf8] sm:$0xff]
    %v688 = vld [vmem:[%s4] sm:$0x1]
    %v690 = vperm.slane %v688, 0
    %692 = vmatpush.msra.mxu0 %v671
    %693 = vmatpush.msra.mxu0 %v670
    %694 = vmatpush.msra.mxu0 %v669
    %695 = vmatpush.msra.mxu0 %v668
    %696 = vmatpush.msra.mxu0 %v667
    %697 = vmatpush.msra.mxu0 %v666
    %698 = vmatpush.msra.mxu0 %v665
    %699 = vmatpush.msra.mxu0 %v664
    %700 = vmatpush.msra.mxu0 %v663
    %701 = vmatpush.msra.mxu0 %v662
    %702 = vmatpush.msra.mxu0 %v661
    %703 = vmatpush.msra.mxu0 %v660
    %704 = vmatpush.msra.mxu0 %v659
    %705 = vmatpush.msra.mxu0 %v658
    %706 = vmatpush.msra.mxu0 %v657
    %707 = vmatpush.msra.mxu0 %v656
    %708 = vmatmul.f32.gmra.mxu0 %v654
    %v709 = vpop.f32.mrf.mxu0
    %v710 = vadd.f32 %v690, %v709
    %711 = vdwg.mxu0
    %712 = vmatpush.msra.mxu0 %v687
    %713 = vmatpush.msra.mxu0 %v686
    %714 = vmatpush.msra.mxu0 %v685
    %715 = vmatpush.msra.mxu0 %v684
    %716 = vmatpush.msra.mxu0 %v683
    %717 = vmatpush.msra.mxu0 %v682
    %718 = vmatpush.msra.mxu0 %v681
    %719 = vmatpush.msra.mxu0 %v680
    %720 = vmatpush.msra.mxu0 %v679
    %721 = vmatpush.msra.mxu0 %v678
    %722 = vmatpush.msra.mxu0 %v677
    %723 = vmatpush.msra.mxu0 %v676
    %724 = vmatpush.msra.mxu0 %v675
    %725 = vmatpush.msra.mxu0 %v674
    %726 = vmatpush.msra.mxu0 %v673
    %727 = vmatpush.msra.mxu0 %v672
    %728 = vmatmul.f32.gmra.mxu0 %v655
    %v729 = vpop.f32.mrf.mxu0
    %v730 = vadd.f32 %v710, %v729
    %731 = vdwg.mxu0
    %v732 = vmax.f32 %v730, 0.0
    %v733 = vld [vmem:[%s5] sm:$0xff]
    %v734 = vld [vmem:[%s5 + $0x8] sm:$0xff]
    %v735 = vld [vmem:[%s5 + $0x10] sm:$0xff]
    %v736 = vld [vmem:[%s5 + $0x18] sm:$0xff]
    %v737 = vld [vmem:[%s5 + $0x20] sm:$0xff]
    %v738 = vld [vmem:[%s5 + $0x28] sm:$0xff]
    %v739 = vld [vmem:[%s5 + $0x30] sm:$0xff]
    %v740 = vld [vmem:[%s5 + $0x38] sm:$0xff]
    %v741 = vld [vmem:[%s5 + $0x40] sm:$0xff]
    %v742 = vld [vmem:[%s5 + $0x48] sm:$0xff]
    %v743 = vld [vmem:[%s5 + $0x50] sm:$0xff]
    %v744 = vld [vmem:[%s5 + $0x58] sm:$0xff]
    %v745 = vld [vmem:[%s5 + $0x60] sm:$0xff]
    %v746 = vld [vmem:[%s5 + $0x68] sm:$0xff]
    %v747 = vld [vmem:[%s5 + $0x70] sm:$0xff]
    %v748 = vld [vmem:[%s5 + $0x78] sm:$0xff]
    %v749 = vld [vmem:[%s6] sm:$0x1]
    %v751 = vperm.slane %v749, 0
    %753 = vmatpush.msra.mxu0 %v748
    %754 = vmatpush.msra.mxu0 %v747
    %755 = vmatpush.msra.mxu0 %v746
    %756 = vmatpush.msra.mxu0 %v745
    %757 = vmatpush.msra.mxu0 %v744
    %758 = vmatpush.msra.mxu0 %v743
    %759 = vmatpush.msra.mxu0 %v742
    %760 = vmatpush.msra.mxu0 %v741
    %761 = vmatpush.msra.mxu0 %v740
    %762 = vmatpush.msra.mxu0 %v739
    %763 = vmatpush.msra.mxu0 %v738
    %764 = vmatpush.msra.mxu0 %v737
    %765 = vmatpush.msra.mxu0 %v736
    %766 = vmatpush.msra.mxu0 %v735
    %767 = vmatpush.msra.mxu0 %v734
    %768 = vmatpush.msra.mxu0 %v733
    %769 = vmatmul.f32.gmra.mxu0 %v732
    %v770 = vpop.f32.mrf.mxu0
    %v771 = vadd.f32 %v751, %v770
    %772 = vdwg.mxu0
    %vm773 = vcmask 39936
    %v774 = vsel %vm773, %v771, -inf
    %775 = vmax.xlane.f32.xlu0 %v774
    %v776 = vpop.xlane.xlu0 %775
    %v777 = vsub.f32 %v771, %v776
    %v778 = vmul.f32 %v777, 1.442695
    %v779 = vpow.pop %v778
    %v780 = vsel %vm773, %v779, 0.0
    %781 = vadd.xlane.f32.xlu0 %v780
    %v782 = vpop.xlane.xlu0 %781
    %v783 = vlog2.pop %v782
    %v784 = vmul.f32 %v783, 0.6931472
    %v785 = vsub.f32 %v777, %v784
    %786 = vst.msk [vmem:[#allocation7] sm:$0xff] %vm773, %v785
    // Predicated region
    $region38: #{tpu_custom_call.1} parent=1 // pred_check
      _
    $region39: #{tpu_custom_call.1} parent=1 // pred_check_branch
      %788 = sbr.rel (0) target = $region41
    $region40: #{tpu_custom_call.1} parent=1 // pred_region
      %790 = vsyncadd [#allocation4], 96
      %s791 = sshll.u32 [#allocation7], 4
      %s792 = int_to_ptr.vmem [resolvable:$true] %s791
      %s793 = sshll.u32 %s7, 4
      %s794 = int_to_ptr.hbm [resolvable:$true] %s793
      %799 = dma.vmem_to_hbm [thread:$0]  %s792, 32, %s794, [#allocation4], 32, 32, 2
    $region41: #{tpu_custom_call.1} parent=1 // pred_fallthru
      _
    // Predicated region
    $region42: #{tpu_custom_call.1} parent=1 // pred_check
      _
    $region43: #{tpu_custom_call.1} parent=1 // pred_check_branch
      %801 = sbr.rel (0) target = $region45
    $region44: #{tpu_custom_call.1} parent=1 // pred_region
      %803 = dma.done [#allocation4], 128
    $region45: #{tpu_custom_call.1} parent=1 // pred_fallthru
      _
    %804 = vsyncpa [#allocation3], 1
    %805 = vsyncpa [#allocation6], 1
    %806 = vsyncpa [#allocation4], 1

</llo_original>
